<compile_context>
chip_gen: v7x
topology: tpu7x:2x2x1
jax: 0.10.0
libtpu: 0.0.40
codegen_flags: <defaults>
</compile_context>

<pallas_src>
import functools

import jax
import jax.numpy as jnp
from jax.experimental import pallas as pl
from jax.experimental.pallas import tpu as pltpu


def _round_up(n: int, m: int) -> int:
    return ((n + m - 1) // m) * m


def qnetwork_kernel(x_ref, w1_ref, b1_ref, w2_ref, b2_ref, o_ref):
    # First Linear (MXU, bf16 operands, f32 accumulation) + bias + ReLU (VPU, f32).
    h = jnp.dot(x_ref[...], w1_ref[...], preferred_element_type=jnp.float32)
    h = jnp.maximum(h + b1_ref[...], 0.0)          # (bm, 64) + (1, 64) broadcast
    # Second Linear (MXU). N is already padded to 128 lanes by the wrapper, so
    # the final store is an unmasked, lane-dense vst.
    q = jnp.dot(h.astype(w2_ref.dtype), w2_ref[...],
                preferred_element_type=jnp.float32)
    o_ref[...] = (q + b2_ref[...]).astype(o_ref.dtype)   # (bm, 128) + (1, 128)


@functools.partial(jax.jit, static_argnames=("bm", "use_bf16"))
def qnetwork_forward(x, w1, b1, w2, b2, *, bm: int = 512, use_bf16: bool = True):
    """x: (B, state_size) f32. Returns (B, action_size) f32.

    bm: batch tile (multiple of 8). For tiny batches the tile shrinks to the
    padded batch so we still run a single cheap grid step.
    """
    assert bm % 8 == 0, "batch tile must be a multiple of 8 sublanes"
    B, S = x.shape
    H = w1.shape[1]
    A = w2.shape[1]

    # --- lane-dense output: pad the second matmul's N to a multiple of 128 ---
    A_pad = _round_up(max(A, 128), 128)
    w2p = jnp.zeros((H, A_pad), w2.dtype).at[:, :A].set(w2)
    b2p = jnp.zeros((1, A_pad), jnp.float32).at[:, :A].set(b2.reshape(1, A))
    b1p = b1.reshape(1, H).astype(jnp.float32)

    # --- batch tiling (pad B up to a whole number of tiles) ---
    bm_eff = min(bm, _round_up(B, 8))
    grid_b = pl.cdiv(B, bm_eff)
    B_pad = grid_b * bm_eff
    if B_pad != B:
        x = jnp.pad(x, ((0, B_pad - B), (0, 0)))

    # --- feed the MXU bf16 (halves x/W DMA bytes, bf16-native matmul) ---
    mxu_dtype = jnp.bfloat16 if use_bf16 else jnp.float32
    xq = x.astype(mxu_dtype)
    w1q = w1.astype(mxu_dtype)
    w2q = w2p.astype(mxu_dtype)

    out = pl.pallas_call(
        qnetwork_kernel,
        out_shape=jax.ShapeDtypeStruct((B_pad, A_pad), jnp.float32),
        grid=(grid_b,),
        in_specs=[
            pl.BlockSpec((bm_eff, S), lambda i: (i, 0)),   # x: tiled on batch
            pl.BlockSpec((S, H), lambda i: (0, 0)),        # W1: VMEM-resident
            pl.BlockSpec((1, H), lambda i: (0, 0)),        # b1: VMEM-resident
            pl.BlockSpec((H, A_pad), lambda i: (0, 0)),    # W2: VMEM-resident
            pl.BlockSpec((1, A_pad), lambda i: (0, 0)),    # b2: VMEM-resident
        ],
        out_specs=pl.BlockSpec((bm_eff, A_pad), lambda i: (i, 0)),
        compiler_params=pltpu.CompilerParams(
            dimension_semantics=("parallel",),
        ),
    )(xq, w1q, b1p, w2q, b2p)

    return out[:B, :A]


def init_params(key, state_size, hidden, action_size):
    """Deterministic init mimicking PyTorch nn.Linear defaults
    (uniform in +/- 1/sqrt(fan_in)). Weights stored as (in, out)."""
    k1, k2, k3, k4 = jax.random.split(key, 4)
    bound1 = 1.0 / jnp.sqrt(jnp.float32(state_size))
    bound2 = 1.0 / jnp.sqrt(jnp.float32(hidden))
    w1 = jax.random.uniform(k1, (state_size, hidden), jnp.float32, -bound1, bound1)
    b1 = jax.random.uniform(k2, (1, hidden), jnp.float32, -bound1, bound1)
    w2 = jax.random.uniform(k3, (hidden, action_size), jnp.float32, -bound2, bound2)
    b2 = jax.random.uniform(k4, (1, action_size), jnp.float32, -bound2, bound2)
    return w1, b1, w2, b2


def _reference(x, w1, b1, w2, b2):
    # Plain-JAX f32 reference (same math as the PyTorch forward).
    return jnp.maximum(x @ w1 + b1, 0.0) @ w2 + b2


if __name__ == "__main__":
    # Sliding-window-of-4-events state => 16-D input, 8 actions, hidden=64.
    state_size, hidden, action_size = 16, 64, 8

    key = jax.random.PRNGKey(0)
    kx, kp, kbig = jax.random.split(key, 3)
    w1, b1, w2, b2 = init_params(kp, state_size, hidden, action_size)

    # bf16 MXU inputs => compare against the f32 reference with a relaxed
    # tolerance (bf16 mantissa ~8 bits).
    TOL = dict(atol=3e-2, rtol=3e-2)

    # 1) Module-spec shape: batch=2 (tile shrinks to 8 padded rows, 1 grid step).
    x_small = jax.random.normal(kx, (2, state_size), jnp.float32)
    q_small = qnetwork_forward(x_small, w1, b1, w2, b2)
    jax.block_until_ready(q_small)
    assert q_small.shape == (2, action_size)
    assert jnp.allclose(q_small, _reference(x_small, w1, b1, w2, b2), **TOL)

    # 2) Larger batch exercising the multi-step batch grid (2 steps of bm=512).
    x_big = jax.random.normal(kbig, (1024, state_size), jnp.float32)
    q_big = qnetwork_forward(x_big, w1, b1, w2, b2, bm=512)
    jax.block_until_ready(q_big)
    assert q_big.shape == (1024, action_size)
    assert jnp.allclose(q_big, _reference(x_big, w1, b1, w2, b2), **TOL)

    print("KERNEL_OK")
</pallas_src>

<mosaic_0001>
module attributes {stable_mosaic.version = 11 : i64} {
  func.func @qnetwork_kernel(%arg0: i32, %arg1: memref<8x16xbf16, #tpu.memory_space<vmem>>, %arg2: memref<16x64xbf16, #tpu.memory_space<vmem>>, %arg3: memref<1x64xf32, #tpu.memory_space<vmem>>, %arg4: memref<64x128xbf16, #tpu.memory_space<vmem>>, %arg5: memref<1x128xf32, #tpu.memory_space<vmem>>, %arg6: memref<8x128xf32, #tpu.memory_space<vmem>>) attributes {dimension_semantics = [#tpu.dimension_semantics<parallel>], iteration_bounds = array<i64: 1>, scalar_prefetch = 0 : i64, scratch_operands = 0 : i64, tpu.core_type = #tpu.core_type<tc>, window_params = [{transform_indices = @transform_0, window_bounds = array<i64: 8, 16>}, {pipeline_mode = #tpu.pipeline_mode<synchronous>, transform_indices = @transform_1, window_bounds = array<i64: 16, 64>}, {pipeline_mode = #tpu.pipeline_mode<synchronous>, transform_indices = @transform_2, window_bounds = array<i64: 1, 64>}, {pipeline_mode = #tpu.pipeline_mode<synchronous>, transform_indices = @transform_3, window_bounds = array<i64: 64, 128>}, {pipeline_mode = #tpu.pipeline_mode<synchronous>, transform_indices = @transform_4, window_bounds = array<i64: 1, 128>}, {transform_indices = @transform_5, window_bounds = array<i64: 8, 128>}]} {
    %c0 = arith.constant 0 : index
    %c0_0 = arith.constant 0 : index
    %0 = vector.load %arg1[%c0, %c0_0] : memref<8x16xbf16, #tpu.memory_space<vmem>>, vector<8x16xbf16>
    %c0_1 = arith.constant 0 : index
    %c0_2 = arith.constant 0 : index
    %1 = vector.load %arg2[%c0_1, %c0_2] : memref<16x64xbf16, #tpu.memory_space<vmem>>, vector<16x64xbf16>
    %cst = arith.constant dense<0.000000e+00> : vector<8x64xf32>
    %2 = tpu.matmul %0, %1, %cst {dimension_numbers = #tpu.dot_dimension_numbers<[1], [0], [0], [1], [0, 0, 1, 1], [], []>} : vector<8x16xbf16>, vector<16x64xbf16>, vector<8x64xf32> -> vector<8x64xf32>
    %c0_3 = arith.constant 0 : index
    %c0_4 = arith.constant 0 : index
    %3 = vector.load %arg3[%c0_3, %c0_4] : memref<1x64xf32, #tpu.memory_space<vmem>>, vector<1x64xf32>
    %4 = vector.broadcast %3 : vector<1x64xf32> to vector<8x64xf32>
    %5 = arith.addf %2, %4 : vector<8x64xf32>
    %cst_5 = arith.constant 0.000000e+00 : f32
    %6 = vector.broadcast %cst_5 : f32 to vector<8x64xf32>
    %7 = arith.maximumf %5, %6 : vector<8x64xf32>
    %8 = arith.truncf %7 : vector<8x64xf32> to vector<8x64xbf16>
    %c0_6 = arith.constant 0 : index
    %c0_7 = arith.constant 0 : index
    %9 = vector.load %arg4[%c0_6, %c0_7] : memref<64x128xbf16, #tpu.memory_space<vmem>>, vector<64x128xbf16>
    %cst_8 = arith.constant dense<0.000000e+00> : vector<8x128xf32>
    %10 = tpu.matmul %8, %9, %cst_8 {dimension_numbers = #tpu.dot_dimension_numbers<[1], [0], [0], [1], [0, 0, 1, 1], [], []>} : vector<8x64xbf16>, vector<64x128xbf16>, vector<8x128xf32> -> vector<8x128xf32>
    %c0_9 = arith.constant 0 : index
    %c0_10 = arith.constant 0 : index
    %11 = vector.load %arg5[%c0_9, %c0_10] : memref<1x128xf32, #tpu.memory_space<vmem>>, vector<1x128xf32>
    %12 = vector.broadcast %11 : vector<1x128xf32> to vector<8x128xf32>
    %13 = arith.addf %10, %12 : vector<8x128xf32>
    %c0_11 = arith.constant 0 : index
    %c0_12 = arith.constant 0 : index
    %14 = vector.load %arg6[%c0_11, %c0_12] : memref<8x128xf32, #tpu.memory_space<vmem>>, vector<8x128xf32>
    tpu.vector_store %arg6[%c0_11, %c0_12], %13 {strides = array<i32>} : memref<8x128xf32, #tpu.memory_space<vmem>>, vector<8x128xf32>,
    return
  }
  func.func @transform_0(%arg0: i32) -> (i32, i32) {
    %c0_i32 = arith.constant 0 : i32
    %c0_i32_0 = arith.constant 0 : i32
    return %arg0, %c0_i32 : i32, i32
  }
  func.func @transform_1(%arg0: i32) -> (i32, i32) {
    %c0_i32 = arith.constant 0 : i32
    %c0_i32_0 = arith.constant 0 : i32
    %c0_i32_1 = arith.constant 0 : i32
    return %c0_i32, %c0_i32_0 : i32, i32
  }
  func.func @transform_2(%arg0: i32) -> (i32, i32) {
    %c0_i32 = arith.constant 0 : i32
    %c0_i32_0 = arith.constant 0 : i32
    %c0_i32_1 = arith.constant 0 : i32
    return %c0_i32, %c0_i32_0 : i32, i32
  }
  func.func @transform_3(%arg0: i32) -> (i32, i32) {
    %c0_i32 = arith.constant 0 : i32
    %c0_i32_0 = arith.constant 0 : i32
    %c0_i32_1 = arith.constant 0 : i32
    return %c0_i32, %c0_i32_0 : i32, i32
  }
  func.func @transform_4(%arg0: i32) -> (i32, i32) {
    %c0_i32 = arith.constant 0 : i32
    %c0_i32_0 = arith.constant 0 : i32
    %c0_i32_1 = arith.constant 0 : i32
    return %c0_i32, %c0_i32_0 : i32, i32
  }
  func.func @transform_5(%arg0: i32) -> (i32, i32) {
    %c0_i32 = arith.constant 0 : i32
    %c0_i32_0 = arith.constant 0 : i32
    return %arg0, %c0_i32 : i32, i32
  }
}

</mosaic_0001>

<llo_original>
// kernel: qnetwork_forward.1
$region0: #{qnetwork_forward.1}
  #allocation0 [shape = 'u32[]', space=smem, size = 0x4, offset = 0x4, fixed_abs, tag = 'smem constant byte address 0x4 - core index']
  #allocation1 [shape = 'u32[144,128]{1,0:T(1,128)}', space=vmem, size = 0x12000, scoped, tag = 'internal scratch']
  %s0 = inlined_call_operand.vmem [shape: bf16[8,16], index: 0, kind: input, shape index: {}]
  %s1 = inlined_call_operand.vmem [shape: bf16[16,64], index: 1, kind: input, shape index: {}]
  %s2 = inlined_call_operand.vmem [shape: f32[1,64], index: 2, kind: input, shape index: {}]
  %s3 = inlined_call_operand.vmem [shape: bf16[64,128], index: 3, kind: input, shape index: {}]
  %s4 = inlined_call_operand.vmem [shape: f32[1,128], index: 4, kind: input, shape index: {}]
  %s5 = inlined_call_operand.vmem [shape: f32[8,128], index: 5, kind: output, shape index: {}]
  %s6 = sld [smem:[#allocation0]]
  $region30: #{qnetwork_forward.1} parent=0
    _
  %s8 = ssub.s32 1, %s6
  %s9 = scalar_select 0, %s8, %s6
  // Predicated region
  $region2: #{qnetwork_forward.1} parent=0 // pred_check
    _
  $region3: #{qnetwork_forward.1} parent=0 // pred_check_branch
    %11 = sbr.rel (0) target = $region5
  $region4: #{qnetwork_forward.1} parent=0 // pred_region
    _
  $region5: #{qnetwork_forward.1} parent=0 // pred_fallthru
    _
  // Predicated region
  $region6: #{qnetwork_forward.1} parent=0 // pred_check
    _
  $region7: #{qnetwork_forward.1} parent=0 // pred_check_branch
    %13 = sbr.rel (0) target = $region9
  $region8: #{qnetwork_forward.1} parent=0 // pred_region
    _
  $region9: #{qnetwork_forward.1} parent=0 // pred_fallthru
    _
  // Predicated region
  $region10: #{qnetwork_forward.1} parent=0 // pred_check
    _
  $region11: #{qnetwork_forward.1} parent=0 // pred_check_branch
    %15 = sbr.rel (0) target = $region13
  $region12: #{qnetwork_forward.1} parent=0 // pred_region
    _
  $region13: #{qnetwork_forward.1} parent=0 // pred_fallthru
    _
  // Predicated region
  $region14: #{qnetwork_forward.1} parent=0 // pred_check
    _
  $region15: #{qnetwork_forward.1} parent=0 // pred_check_branch
    %17 = sbr.rel (0) target = $region17
  $region16: #{qnetwork_forward.1} parent=0 // pred_region
    _
  $region17: #{qnetwork_forward.1} parent=0 // pred_fallthru
    _
  // Predicated region
  $region18: #{qnetwork_forward.1} parent=0 // pred_check
    _
  $region19: #{qnetwork_forward.1} parent=0 // pred_check_branch
    %19 = sbr.rel (0) target = $region21
  $region20: #{qnetwork_forward.1} parent=0 // pred_region
    _
  $region21: #{qnetwork_forward.1} parent=0 // pred_fallthru
    _
  %v21 = vld [vmem:[%s0] sm:$0xf]
  %v22 = vld [vmem:[%s1] sm:$0xf]
  %v23 = vld [vmem:[%s1 + $0x4] sm:$0xf]
  %v24 = vld [vmem:[%s2] sm:$0x1]
  %v26 = vlaneseq
  %v27 = vshrl.u32 %v26, 7
  %v28 = vsub.s32 0, %v27
  %v29 = vrot.slane %v24, %v28
  %v33 = vunpack.c.l.b16 %v22
  %v34 = vunpack.c.l.b16 %v23
  %v35 = vpack.c.b16 %v34, %v33
  %vm37 = vcmask 130048
  %v39 = vsel %vm37, %v21, 0
  %41 = vmatprep.subr.bf16.mxu0 0
  %42 = vmatpush1.bf16.msra.mxu0 %v35
  %43 = vmatprep.subr.bf16.mxu0 0
  %44 = vmatpush1.bf16.msra.mxu0 0
  %45 = vmatprep.subr.bf16.mxu0 0
  %46 = vmatpush1.bf16.msra.mxu0 0
  %47 = vmatprep.subr.bf16.mxu0 0
  %48 = vmatpush1.bf16.msra.mxu0 0
  %49 = vmatprep.subr.bf16.mxu0 0
  %50 = vmatpush1.bf16.msra.mxu0 0
  %51 = vmatprep.subr.bf16.mxu0 0
  %52 = vmatpush1.bf16.msra.mxu0 0
  %53 = vmatprep.subr.bf16.mxu0 0
  %54 = vmatpush1.bf16.msra.mxu0 0
  %55 = vmatprep.subr.bf16.mxu0 0
  %56 = vmatpush1.bf16.msra.mxu0 0
  %57 = vmatprep.subr.bf16.mxu0 0
  %58 = vmatpush1.bf16.msra.mxu0 0
  %59 = vmatprep.subr.bf16.mxu0 0
  %60 = vmatpush1.bf16.msra.mxu0 0
  %61 = vmatprep.subr.bf16.mxu0 0
  %62 = vmatpush1.bf16.msra.mxu0 0
  %63 = vmatprep.subr.bf16.mxu0 0
  %64 = vmatpush1.bf16.msra.mxu0 0
  %65 = vmatprep.subr.bf16.mxu0 0
  %66 = vmatpush1.bf16.msra.mxu0 0
  %67 = vmatprep.subr.bf16.mxu0 0
  %68 = vmatpush1.bf16.msra.mxu0 0
  %69 = vmatprep.subr.bf16.mxu0 0
  %70 = vmatpush1.bf16.msra.mxu0 0
  %71 = vmatprep.subr.bf16.mxu0 0
  %72 = vmatpush1.bf16.msra.mxu0 0
  %73 = vmatprep.mubr.bf16.mxu0 0
  %74 = vmatmul.mubr.bf16.gmra.mrb[0].mxu0 %v39
  %v75 = vpop.f32.mrb[0].mxu0
  %v76 = vadd.f32 %v29, %v75
  %v77 = vpop.f32.mrb[0].mxu0
  %v78 = vpop.f32.mrb[0].mxu0
  %v79 = vpop.f32.mrb[0].mxu0
  %80 = vdwg.mxu0
  %v81 = vmax.f32 %v76, 0.0
  %v82 = vpack.c.bf16 %v81, %v81
  %v83 = vld [vmem:[%s3] sm:$0xf]
  %v84 = vld [vmem:[%s3 + $0x4] sm:$0xf]
  %v85 = vld [vmem:[%s3 + $0x8] sm:$0xf]
  %v86 = vld [vmem:[%s3 + $0xc] sm:$0xf]
  %v87 = vld [vmem:[%s3 + $0x10] sm:$0xf]
  %v88 = vld [vmem:[%s3 + $0x14] sm:$0xf]
  %v89 = vld [vmem:[%s3 + $0x18] sm:$0xf]
  %v90 = vld [vmem:[%s3 + $0x1c] sm:$0xf]
  %v91 = vld [vmem:[%s4] sm:$0x1]
  %v93 = vlaneseq
  %v94 = vshrl.u32 %v93, 7
  %v95 = vsub.s32 0, %v94
  %v96 = vrot.slane %v91, %v95
  %v106 = vunpack.c.l.b16 %v83
  %v107 = vunpack.c.l.b16 %v84
  %v108 = vunpack.c.l.b16 %v85
  %v109 = vunpack.c.l.b16 %v86
  %v110 = vunpack.c.l.b16 %v87
  %v111 = vunpack.c.l.b16 %v88
  %v112 = vunpack.c.l.b16 %v89
  %v113 = vunpack.c.l.b16 %v90
  %v114 = vpack.c.b16 %v107, %v106
  %v115 = vpack.c.b16 %v109, %v108
  %v116 = vpack.c.b16 %v111, %v110
  %v117 = vpack.c.b16 %v113, %v112
  %vm122 = vcmask 523264
  %v124 = vsel %vm122, %v82, 0
  %126 = vmatprep.subr.bf16.mxu0 0
  %127 = vmatpush1.bf16.msra.mxu0 %v114
  %128 = vmatprep.subr.bf16.mxu0 0
  %129 = vmatpush1.bf16.msra.mxu0 %v115
  %130 = vmatprep.subr.bf16.mxu0 0
  %131 = vmatpush1.bf16.msra.mxu0 %v116
  %132 = vmatprep.subr.bf16.mxu0 0
  %133 = vmatpush1.bf16.msra.mxu0 %v117
  %134 = vmatprep.subr.bf16.mxu0 0
  %135 = vmatpush1.bf16.msra.mxu0 0
  %136 = vmatprep.subr.bf16.mxu0 0
  %137 = vmatpush1.bf16.msra.mxu0 0
  %138 = vmatprep.subr.bf16.mxu0 0
  %139 = vmatpush1.bf16.msra.mxu0 0
  %140 = vmatprep.subr.bf16.mxu0 0
  %141 = vmatpush1.bf16.msra.mxu0 0
  %142 = vmatprep.subr.bf16.mxu0 0
  %143 = vmatpush1.bf16.msra.mxu0 0
  %144 = vmatprep.subr.bf16.mxu0 0
  %145 = vmatpush1.bf16.msra.mxu0 0
  %146 = vmatprep.subr.bf16.mxu0 0
  %147 = vmatpush1.bf16.msra.mxu0 0
  %148 = vmatprep.subr.bf16.mxu0 0
  %149 = vmatpush1.bf16.msra.mxu0 0
  %150 = vmatprep.subr.bf16.mxu0 0
  %151 = vmatpush1.bf16.msra.mxu0 0
  %152 = vmatprep.subr.bf16.mxu0 0
  %153 = vmatpush1.bf16.msra.mxu0 0
  %154 = vmatprep.subr.bf16.mxu0 0
  %155 = vmatpush1.bf16.msra.mxu0 0
  %156 = vmatprep.subr.bf16.mxu0 0
  %157 = vmatpush1.bf16.msra.mxu0 0
  %158 = vmatprep.mubr.bf16.mxu0 0
  %159 = vmatmul.mubr.bf16.gmra.mrb[0].mxu0 %v124
  %v160 = vpop.f32.mrb[0].mxu0
  %v161 = vadd.f32 %v96, %v160
  %v162 = vpop.f32.mrb[0].mxu0
  %v163 = vpop.f32.mrb[0].mxu0
  %v164 = vpop.f32.mrb[0].mxu0
  %165 = vdwg.mxu0
  %166 = vst [vmem:[%s5] sm:$0xff] %v161
  // Predicated region
  $region22: #{qnetwork_forward.1} parent=0 // pred_check
    _
  $region23: #{qnetwork_forward.1} parent=0 // pred_check_branch
    %168 = sbr.rel (0) target = $region25
  $region24: #{qnetwork_forward.1} parent=0 // pred_region
    _
  $region25: #{qnetwork_forward.1} parent=0 // pred_fallthru
    _
  // Predicated region
  $region26: #{qnetwork_forward.1} parent=0 // pred_check
    _
  $region27: #{qnetwork_forward.1} parent=0 // pred_check_branch
    %170 = sbr.rel (0) target = $region29
  $region28: #{qnetwork_forward.1} parent=0 // pred_region
    _
  $region29: #{qnetwork_forward.1} parent=0 // pred_fallthru
    _

</llo_original>
